<compile_context>
chip_gen: v7x
topology: tpu7x:2x2x1
jax: 0.10.0
libtpu: 0.0.40
codegen_flags: <defaults>
</compile_context>

<pallas_src>
import jax
import jax.numpy as jnp
from jax.experimental import pallas as pl
from jax.experimental.pallas import tpu as pltpu


# ----------------------------------------------------------------------------
# Aliased true no-op: the output buffer IS the input buffer (zero data movement).
# ----------------------------------------------------------------------------
def _identity_noop_kernel(x_hbm, o_hbm):
    # o_hbm aliases x_hbm (input_output_aliases={0: 0}); the bytes are already
    # in place, so there is nothing to do: no DMA, no VMEM, no VPU/vld/vst.
    del x_hbm, o_hbm


def identity(x):
    """Pallas identity: y = x (forward of nn.Identity).

    True zero-copy when the caller donates x, e.g.
        y = jax.jit(identity, donate_argnums=0)(x)
    Without donation XLA inserts a single copy so x stays valid for the caller.
    """
    return pl.pallas_call(
        _identity_noop_kernel,
        out_shape=jax.ShapeDtypeStruct(x.shape, x.dtype),
        in_specs=[pl.BlockSpec(memory_space=pl.ANY)],   # raw HBM ref, no auto-DMA
        out_specs=pl.BlockSpec(memory_space=pl.ANY),    # raw HBM ref
        input_output_aliases={0: 0},                    # y aliases x
        cost_estimate=pl.CostEstimate(
            flops=0, transcendentals=0, bytes_accessed=0),
    )(x)


# ----------------------------------------------------------------------------
# Non-aliased copy: K concurrent HBM->HBM DMAs (start all, then wait all).
# ----------------------------------------------------------------------------
def _make_copy_kernel(chunk_bounds):
    num_chunks = len(chunk_bounds) - 1

    def kernel(x_hbm, o_hbm, sems):
        copies = []
        for i in range(num_chunks):
            lo = chunk_bounds[i]
            sz = chunk_bounds[i + 1] - lo
            if num_chunks == 1:
                src, dst = x_hbm, o_hbm
            else:
                src = x_hbm.at[pl.ds(lo, sz)]
                dst = o_hbm.at[pl.ds(lo, sz)]
            copies.append(pltpu.make_async_copy(src, dst, sems.at[i]))
        for cp in copies:          # start all: multiple outstanding descriptors
            cp.start()
        for cp in copies:          # then wait all
            cp.wait()

    return kernel


def identity_copy(x, num_chunks=4):
    """Pallas identity that materializes a fresh (non-aliased) copy of x.

    Grid-less pallas_call; the kernel issues up to `num_chunks` concurrent
    contiguous HBM->HBM DMAs over the leading axis to better saturate HBM
    bandwidth on v6e/v7x for large tensors.  No VMEM is used, so v7x's smaller
    64 MiB VMEM limit is irrelevant.
    """
    lead = x.shape[0] if x.ndim >= 1 else 1
    k = int(max(1, min(num_chunks, lead)))
    bounds = [round(i * lead / k) for i in range(k + 1)]

    return pl.pallas_call(
        _make_copy_kernel(bounds),
        out_shape=jax.ShapeDtypeStruct(x.shape, x.dtype),
        in_specs=[pl.BlockSpec(memory_space=pl.ANY)],    # raw HBM ref, no auto-DMA
        out_specs=pl.BlockSpec(memory_space=pl.ANY),     # raw HBM ref
        scratch_shapes=[pltpu.SemaphoreType.DMA((k,))],  # shaped semaphore array
        cost_estimate=pl.CostEstimate(
            flops=0, transcendentals=0,
            bytes_accessed=2 * x.size * x.dtype.itemsize),
    )(x)


if __name__ == "__main__":
    key = jax.random.PRNGKey(0)
    # Small NCHW input consistent with a conv-style net: batch=2, C=4, H=W=16.
    x = jax.random.normal(key, (2, 4, 16, 16), dtype=jnp.float32)

    # 1) Aliased no-op path (x is not donated here, so XLA inserts one copy and
    #    x stays valid for the comparisons below).
    y = identity(x)
    jax.block_until_ready(y)
    assert y.shape == x.shape and y.dtype == x.dtype
    assert bool(jnp.all(y == x))

    # 2) Same path with donation at the jit boundary: the true zero-copy form.
    x_donated = jnp.array(x)  # separate buffer we are allowed to give up
    y_donated = jax.jit(identity, donate_argnums=0)(x_donated)
    jax.block_until_ready(y_donated)
    assert bool(jnp.all(y_donated == x))

    # 3) Non-aliased chunked-DMA copy path.
    y_copy = identity_copy(x)
    jax.block_until_ready(y_copy)
    assert y_copy.shape == x.shape and y_copy.dtype == x.dtype
    assert bool(jnp.all(y_copy == x))

    print("KERNEL_OK")
</pallas_src>

<mosaic_0001>
module attributes {stable_mosaic.version = 11 : i64} {
  func.func @_identity_noop_kernel(%arg0: memref<2x4x16x16xf32, #tpu.memory_space<any>>, %arg1: memref<2x4x16x16xf32, #tpu.memory_space<any>>) attributes {dimension_semantics = [], scalar_prefetch = 0 : i64, scratch_operands = 0 : i64, tpu.core_type = #tpu.core_type<tc>} {
    return
  }
}

</mosaic_0001>

<llo_original>
// kernel: tpu_custom_call.1
$region0: #{tpu_custom_call.1}
  #allocation0 [shape = 'u32[]', space=smem, size = 0x4, offset = 0x4, fixed_abs, tag = 'smem constant byte address 0x4 - core index']
  #allocation1 [shape = 'u32[144,128]{1,0:T(1,128)}', space=vmem, size = 0x12000, scoped, tag = 'internal scratch']
  %s0 = inlined_call_operand.hbm [shape: f32[2,4,16,16], index: 0, kind: input, shape index: {}, may-alias: {0,1}]
  %s1 = inlined_call_operand.hbm [shape: f32[2,4,16,16], index: 1, kind: output, shape index: {}, may-alias: {0,1}]
  %s2 = sld [smem:[#allocation0]]
  $region2: #{tpu_custom_call.1} parent=0
    _
  %s4 = ssub.s32 1, %s2
  %s5 = scalar_select 0, %s4, %s2

</llo_original>
